<compile_context>
chip_gen: v6e
topology: v6e:2x2x1
jax: 0.10.0
libtpu: 0.0.40
codegen_flags: <defaults>
</compile_context>

<pallas_src>
import jax
import jax.numpy as jnp
from jax.experimental import pallas as pl
from jax.experimental.pallas import tpu as pltpu


def _round_up(n, m):
    return ((n + m - 1) // m) * m


def _leaky_relu(x, slope=0.01):
    return jnp.where(x >= 0, x, slope * x)


def discriminator_kernel(x_ref, w1_ref, b1_ref, w2_ref, b2_ref, w3_ref, b3_ref, o_ref):
    # ----- Layer 1: Linear(784 -> H) + LeakyReLU (Dropout -> identity, eval) -----
    # x arrives f32 from HBM (no extra wrapper pass); cast to bf16 in VMEM for the
    # MXU and accumulate in f32.
    x_bf16 = x_ref[...].astype(jnp.bfloat16)
    h1 = jnp.dot(x_bf16, w1_ref[...], preferred_element_type=jnp.float32) + b1_ref[...]
    h1 = _leaky_relu(h1)  # f32 VPU math (v5e has no bf16 VPU)

    # ----- Layer 2: Linear(H -> H) + LeakyReLU (Dropout -> identity) -----
    h2 = jnp.dot(h1.astype(jnp.bfloat16), w2_ref[...],
                 preferred_element_type=jnp.float32) + b2_ref[...]
    h2 = _leaky_relu(h2)

    # ----- Layer 3: Linear(H -> 1) + Sigmoid -----
    # N=1 matmul -> VPU multiply + lane (XLU) reduction; MXU stays free.
    # w3_ref is the weight presented as a (1, H) row; b3 is an SMEM scalar.
    h3 = jnp.sum(h2 * w3_ref[...], axis=-1, keepdims=True) + b3_ref[0, 0]

    # Sigmoid epilogue: exp + reciprocal run on the (otherwise idle) EUP.
    o_ref[...] = (1.0 / (1.0 + jnp.exp(-h3))).astype(o_ref.dtype)


def discriminator_forward(x, params, tile_b=None):
    """x: (B, 784) float32. Returns (B, 1) float32."""
    w1, b1, w2, b2, w3, b3 = params
    B, D = x.shape
    H = w1.shape[1]

    # Pad only to a multiple of 8 rows (at most 7 extra); no TILE_B padding.
    B8 = _round_up(B, 8)
    if B8 != B:
        x = jnp.pad(x, ((0, B8 - B), (0, 0)))

    # Batch tile: big enough to amortize the ~0.35 us per-grid-step overhead,
    # small enough that double-buffered f32 x tiles fit v5e's 16 MiB scoped VMEM.
    if tile_b is None:
        tile_b = min(1024, B8)
    assert tile_b % 8 == 0, "tile_b must be a multiple of 8"
    num_tiles = pl.cdiv(B8, tile_b)

    # Weights are tiny (few tens of KiB) -> one-time bf16 cast in the wrapper;
    # they stay VMEM-resident across grid steps (constant index_map).
    w1_b = w1.astype(jnp.bfloat16)                  # (784, H), unpadded K
    w2_b = w2.astype(jnp.bfloat16)                  # (H, H)
    w3_row = w3.reshape(1, H).astype(jnp.float32)   # (H, 1) -> (1, H)
    b3_s = b3.reshape(1, 1).astype(jnp.float32)     # SMEM scalar

    # Advisory cost: tells XLA this custom call is HBM-bound on x.
    weight_bytes = w1_b.size * 2 + w2_b.size * 2 + b1.size * 4 + b2.size * 4 + H * 4 + 4
    cost = pl.CostEstimate(
        flops=2 * B8 * (D * H + H * H + H),
        transcendentals=B8,
        bytes_accessed=B8 * D * 4 + B8 * 4 + weight_bytes,
    )

    out = pl.pallas_call(
        discriminator_kernel,
        out_shape=jax.ShapeDtypeStruct((B8, 1), jnp.float32),
        grid=(num_tiles,),
        in_specs=[
            pl.BlockSpec((tile_b, D), lambda i: (i, 0)),        # x: streamed batch tiles
            pl.BlockSpec((D, H), lambda i: (0, 0)),             # w1: VMEM-resident
            pl.BlockSpec((1, H), lambda i: (0, 0)),             # b1
            pl.BlockSpec((H, H), lambda i: (0, 0)),             # w2
            pl.BlockSpec((1, H), lambda i: (0, 0)),             # b2
            pl.BlockSpec((1, H), lambda i: (0, 0)),             # w3 as a row
            pl.BlockSpec(memory_space=pltpu.MemorySpace.SMEM),  # b3 scalar
        ],
        out_specs=pl.BlockSpec((tile_b, 1), lambda i: (i, 0)),
        compiler_params=pltpu.CompilerParams(
            dimension_semantics=("parallel",),  # megacore sharding on v7x
        ),
        cost_estimate=cost,
    )(x, w1_b, b1, w2_b, b2, w3_row, b3_s)

    return out[:B]


def init_params(key, d_in, d_hidden):
    """Matches the PyTorch init: xavier_normal_ for weights, uniform(0.1, 0.2) for biases.
    Weights stored as (in, out), i.e. transposed vs. PyTorch's (out, in)."""
    ks = jax.random.split(key, 6)

    def xavier_normal(k, fan_in, fan_out):
        std = (2.0 / (fan_in + fan_out)) ** 0.5
        return std * jax.random.normal(k, (fan_in, fan_out), dtype=jnp.float32)

    w1 = xavier_normal(ks[0], d_in, d_hidden)
    b1 = jax.random.uniform(ks[1], (1, d_hidden), jnp.float32, 0.1, 0.2)
    w2 = xavier_normal(ks[2], d_hidden, d_hidden)
    b2 = jax.random.uniform(ks[3], (1, d_hidden), jnp.float32, 0.1, 0.2)
    w3 = xavier_normal(ks[4], d_hidden, 1)
    b3 = jax.random.uniform(ks[5], (1, 1), jnp.float32, 0.1, 0.2)
    return (w1, b1, w2, b2, w3, b3)


def reference_forward(x, params):
    """Plain-JAX reference with the same bf16-input / f32-accumulate numerics."""
    w1, b1, w2, b2, w3, b3 = params
    xb = x.astype(jnp.bfloat16)
    w1b = w1.astype(jnp.bfloat16)
    w2b = w2.astype(jnp.bfloat16)
    h1 = _leaky_relu(jnp.dot(xb, w1b, preferred_element_type=jnp.float32) + b1)
    h2 = _leaky_relu(jnp.dot(h1.astype(jnp.bfloat16), w2b,
                             preferred_element_type=jnp.float32) + b2)
    h3 = h2 @ w3 + b3
    return 1.0 / (1.0 + jnp.exp(-h3))


if __name__ == "__main__":
    key = jax.random.PRNGKey(0)
    k_x, k_x2, k_x3, k_p = jax.random.split(key, 4)

    D_IN, D_HIDDEN = 28 * 28, 32
    params = init_params(k_p, D_IN, D_HIDDEN)

    # Small-shape check (single tile, B multiple of 8, no padding anywhere).
    B = 8
    x = jax.random.normal(k_x, (B, D_IN), dtype=jnp.float32)
    out = jax.block_until_ready(discriminator_forward(x, params))
    ref = reference_forward(x, params)
    assert out.shape == (B, 1), out.shape
    assert jnp.allclose(out, ref, atol=1e-5, rtol=1e-5), "mismatch vs JAX reference (B=8)"

    # Multi-tile check with a partial final block (520 = 4*128 + 8, tile_b forced to 128).
    B2 = 520
    x2 = jax.random.normal(k_x2, (B2, D_IN), dtype=jnp.float32)
    out2 = jax.block_until_ready(discriminator_forward(x2, params, tile_b=128))
    ref2 = reference_forward(x2, params)
    assert out2.shape == (B2, 1), out2.shape
    assert jnp.allclose(out2, ref2, atol=1e-5, rtol=1e-5), "mismatch vs JAX reference (B=520)"

    # Non-multiple-of-8 batch (exercises the minimal pad-to-8 path).
    B3 = 30
    x3 = jax.random.normal(k_x3, (B3, D_IN), dtype=jnp.float32)
    out3 = jax.block_until_ready(discriminator_forward(x3, params))
    ref3 = reference_forward(x3, params)
    assert out3.shape == (B3, 1), out3.shape
    assert jnp.allclose(out3, ref3, atol=1e-5, rtol=1e-5), "mismatch vs JAX reference (B=30)"

    print("KERNEL_OK")
</pallas_src>

<mosaic_0001>
module attributes {stable_mosaic.version = 11 : i64} {
  func.func @discriminator_kernel(%arg0: i32, %arg1: memref<8x784xf32, #tpu.memory_space<vmem>>, %arg2: memref<784x32xbf16, #tpu.memory_space<vmem>>, %arg3: memref<1x32xf32, #tpu.memory_space<vmem>>, %arg4: memref<32x32xbf16, #tpu.memory_space<vmem>>, %arg5: memref<1x32xf32, #tpu.memory_space<vmem>>, %arg6: memref<1x32xf32, #tpu.memory_space<vmem>>, %arg7: memref<1x1xf32, #tpu.memory_space<smem>>, %arg8: memref<8x1xf32, #tpu.memory_space<vmem>>) attributes {dimension_semantics = [#tpu.dimension_semantics<parallel>], iteration_bounds = array<i64: 1>, scalar_prefetch = 0 : i64, scratch_operands = 0 : i64, tpu.core_type = #tpu.core_type<tc>, window_params = [{transform_indices = @transform_0, window_bounds = array<i64: 8, 784>}, {pipeline_mode = #tpu.pipeline_mode<synchronous>, transform_indices = @transform_1, window_bounds = array<i64: 784, 32>}, {pipeline_mode = #tpu.pipeline_mode<synchronous>, transform_indices = @transform_2, window_bounds = array<i64: 1, 32>}, {pipeline_mode = #tpu.pipeline_mode<synchronous>, transform_indices = @transform_3, window_bounds = array<i64: 32, 32>}, {pipeline_mode = #tpu.pipeline_mode<synchronous>, transform_indices = @transform_4, window_bounds = array<i64: 1, 32>}, {pipeline_mode = #tpu.pipeline_mode<synchronous>, transform_indices = @transform_5, window_bounds = array<i64: 1, 32>}, {transform_indices = @transform_6, window_bounds = array<i64: 1, 1>}, {transform_indices = @transform_7, window_bounds = array<i64: 8, 1>}]} {
    %c0 = arith.constant 0 : index
    %c0_0 = arith.constant 0 : index
    %0 = vector.load %arg1[%c0, %c0_0] : memref<8x784xf32, #tpu.memory_space<vmem>>, vector<8x784xf32>
    %1 = arith.truncf %0 : vector<8x784xf32> to vector<8x784xbf16>
    %c0_1 = arith.constant 0 : index
    %c0_2 = arith.constant 0 : index
    %2 = vector.load %arg2[%c0_1, %c0_2] : memref<784x32xbf16, #tpu.memory_space<vmem>>, vector<784x32xbf16>
    %cst = arith.constant dense<0.000000e+00> : vector<8x32xf32>
    %3 = tpu.matmul %1, %2, %cst {dimension_numbers = #tpu.dot_dimension_numbers<[1], [0], [0], [1], [0, 0, 1, 1], [], []>} : vector<8x784xbf16>, vector<784x32xbf16>, vector<8x32xf32> -> vector<8x32xf32>
    %c0_3 = arith.constant 0 : index
    %c0_4 = arith.constant 0 : index
    %4 = vector.load %arg3[%c0_3, %c0_4] : memref<1x32xf32, #tpu.memory_space<vmem>>, vector<1x32xf32>
    %5 = vector.broadcast %4 : vector<1x32xf32> to vector<8x32xf32>
    %6 = arith.addf %3, %5 : vector<8x32xf32>
    %cst_5 = arith.constant 0.000000e+00 : f32
    %7 = vector.broadcast %cst_5 : f32 to vector<8x32xf32>
    %8 = arith.cmpf oge, %6, %7 : vector<8x32xf32>
    %cst_6 = arith.constant 0.00999999977 : f32
    %9 = vector.broadcast %cst_6 : f32 to vector<8x32xf32>
    %10 = arith.mulf %9, %6 : vector<8x32xf32>
    %11 = arith.select %8, %6, %10 : vector<8x32xi1>, vector<8x32xf32>
    %12 = arith.truncf %11 : vector<8x32xf32> to vector<8x32xbf16>
    %c0_7 = arith.constant 0 : index
    %c0_8 = arith.constant 0 : index
    %13 = vector.load %arg4[%c0_7, %c0_8] : memref<32x32xbf16, #tpu.memory_space<vmem>>, vector<32x32xbf16>
    %cst_9 = arith.constant dense<0.000000e+00> : vector<8x32xf32>
    %14 = tpu.matmul %12, %13, %cst_9 {dimension_numbers = #tpu.dot_dimension_numbers<[1], [0], [0], [1], [0, 0, 1, 1], [], []>} : vector<8x32xbf16>, vector<32x32xbf16>, vector<8x32xf32> -> vector<8x32xf32>
    %c0_10 = arith.constant 0 : index
    %c0_11 = arith.constant 0 : index
    %15 = vector.load %arg5[%c0_10, %c0_11] : memref<1x32xf32, #tpu.memory_space<vmem>>, vector<1x32xf32>
    %16 = vector.broadcast %15 : vector<1x32xf32> to vector<8x32xf32>
    %17 = arith.addf %14, %16 : vector<8x32xf32>
    %cst_12 = arith.constant 0.000000e+00 : f32
    %18 = vector.broadcast %cst_12 : f32 to vector<8x32xf32>
    %19 = arith.cmpf oge, %17, %18 : vector<8x32xf32>
    %cst_13 = arith.constant 0.00999999977 : f32
    %20 = vector.broadcast %cst_13 : f32 to vector<8x32xf32>
    %21 = arith.mulf %20, %17 : vector<8x32xf32>
    %22 = arith.select %19, %17, %21 : vector<8x32xi1>, vector<8x32xf32>
    %c0_14 = arith.constant 0 : index
    %c0_15 = arith.constant 0 : index
    %23 = vector.load %arg6[%c0_14, %c0_15] : memref<1x32xf32, #tpu.memory_space<vmem>>, vector<1x32xf32>
    %24 = vector.broadcast %23 : vector<1x32xf32> to vector<8x32xf32>
    %25 = arith.mulf %22, %24 : vector<8x32xf32>
    %cst_16 = arith.constant dense<0.000000e+00> : vector<8xf32>
    %26 = vector.multi_reduction <add>, %25, %cst_16 [1] : vector<8x32xf32> to vector<8xf32>
    %27 = vector.shape_cast %26 : vector<8xf32> to vector<8x1xf32>
    %c0_17 = arith.constant 0 : index
    %c0_18 = arith.constant 0 : index
    %28 = memref.load %arg7[%c0_17, %c0_18] : memref<1x1xf32, #tpu.memory_space<smem>>
    %29 = vector.broadcast %28 : f32 to vector<8x1xf32>
    %30 = arith.addf %27, %29 : vector<8x1xf32>
    %cst_19 = arith.constant 0.000000e+00 : f32
    %31 = vector.broadcast %cst_19 : f32 to vector<8x1xf32>
    %32 = arith.subf %31, %30 : vector<8x1xf32>
    %33 = math.exp %32 : vector<8x1xf32>
    %cst_20 = arith.constant 1.000000e+00 : f32
    %34 = vector.broadcast %cst_20 : f32 to vector<8x1xf32>
    %35 = arith.addf %34, %33 : vector<8x1xf32>
    %cst_21 = arith.constant 1.000000e+00 : f32
    %36 = vector.broadcast %cst_21 : f32 to vector<8x1xf32>
    %37 = arith.divf %36, %35 : vector<8x1xf32>
    %c0_22 = arith.constant 0 : index
    %c0_23 = arith.constant 0 : index
    %38 = vector.load %arg8[%c0_22, %c0_23] : memref<8x1xf32, #tpu.memory_space<vmem>>, vector<8x1xf32>
    tpu.vector_store %arg8[%c0_22, %c0_23], %37 {strides = array<i32>} : memref<8x1xf32, #tpu.memory_space<vmem>>, vector<8x1xf32>,
    return
  }
  func.func @transform_0(%arg0: i32) -> (i32, i32) {
    %c0_i32 = arith.constant 0 : i32
    %c0_i32_0 = arith.constant 0 : i32
    return %arg0, %c0_i32 : i32, i32
  }
  func.func @transform_1(%arg0: i32) -> (i32, i32) {
    %c0_i32 = arith.constant 0 : i32
    %c0_i32_0 = arith.constant 0 : i32
    %c0_i32_1 = arith.constant 0 : i32
    return %c0_i32, %c0_i32_0 : i32, i32
  }
  func.func @transform_2(%arg0: i32) -> (i32, i32) {
    %c0_i32 = arith.constant 0 : i32
    %c0_i32_0 = arith.constant 0 : i32
    %c0_i32_1 = arith.constant 0 : i32
    return %c0_i32, %c0_i32_0 : i32, i32
  }
  func.func @transform_3(%arg0: i32) -> (i32, i32) {
    %c0_i32 = arith.constant 0 : i32
    %c0_i32_0 = arith.constant 0 : i32
    %c0_i32_1 = arith.constant 0 : i32
    return %c0_i32, %c0_i32_0 : i32, i32
  }
  func.func @transform_4(%arg0: i32) -> (i32, i32) {
    %c0_i32 = arith.constant 0 : i32
    %c0_i32_0 = arith.constant 0 : i32
    %c0_i32_1 = arith.constant 0 : i32
    return %c0_i32, %c0_i32_0 : i32, i32
  }
  func.func @transform_5(%arg0: i32) -> (i32, i32) {
    %c0_i32 = arith.constant 0 : i32
    %c0_i32_0 = arith.constant 0 : i32
    %c0_i32_1 = arith.constant 0 : i32
    return %c0_i32, %c0_i32_0 : i32, i32
  }
  func.func @transform_6(%arg0: i32) -> (i32, i32) {
    %c0_i32 = arith.constant 0 : i32
    %c0_i32_0 = arith.constant 0 : i32
    %c0_i32_1 = arith.constant 0 : i32
    return %c0_i32, %c0_i32_0 : i32, i32
  }
  func.func @transform_7(%arg0: i32) -> (i32, i32) {
    %c0_i32 = arith.constant 0 : i32
    %c0_i32_0 = arith.constant 0 : i32
    return %arg0, %c0_i32 : i32, i32
  }
}

</mosaic_0001>

<llo_original>
// kernel: tpu_custom_call.1
$region0: #{tpu_custom_call.1}
  #allocation0 [shape = 'u32[]', space=smem, size = 0x4, offset = 0x4, fixed_abs, tag = 'smem constant byte address 0x4 - core index']
  #allocation1 [shape = 'u32[144,128]{1,0:T(1,128)}', space=vmem, size = 0x12000, scoped, tag = 'internal scratch']
  #allocation2 [shape = 'f32[1,1]{1,0:T(1,128)S(6)}', space=smem, size = 0x200, scoped, tag = 'scoped memory for tpu_custom_call.1']
  %s0 = inlined_call_operand.vmem [shape: f32[8,784], index: 0, kind: input, shape index: {}]
  %s1 = inlined_call_operand.vmem [shape: bf16[784,32], index: 1, kind: input, shape index: {}]
  %s2 = inlined_call_operand.vmem [shape: f32[1,32], index: 2, kind: input, shape index: {}]
  %s3 = inlined_call_operand.vmem [shape: bf16[32,32], index: 3, kind: input, shape index: {}]
  %s4 = inlined_call_operand.vmem [shape: f32[1,32], index: 4, kind: input, shape index: {}]
  %s5 = inlined_call_operand.vmem [shape: f32[1,32], index: 5, kind: input, shape index: {}]
  %s6 = inlined_call_operand.<no memory space> [shape: f32[1,1], index: 6, kind: input, shape index: {}]
  %s7 = inlined_call_operand.vmem [shape: f32[8,1], index: 7, kind: output, shape index: {}]
  %s8 = sld [smem:[#allocation0]]
  $region38: #{tpu_custom_call.1} parent=0
    _
  %s10 = ssub.s32 1, %s8
  %s11 = scalar_select 0, %s10, %s8
  %12 = sst [smem:[#allocation2]] %s6
  // Predicated region
  $region2: #{tpu_custom_call.1} parent=0 // pred_check
    _
  $region3: #{tpu_custom_call.1} parent=0 // pred_check_branch
    %14 = sbr.rel (0) target = $region5
  $region4: #{tpu_custom_call.1} parent=0 // pred_region
    _
  $region5: #{tpu_custom_call.1} parent=0 // pred_fallthru
    _
  // Predicated region
  $region6: #{tpu_custom_call.1} parent=0 // pred_check
    _
  $region7: #{tpu_custom_call.1} parent=0 // pred_check_branch
    %16 = sbr.rel (0) target = $region9
  $region8: #{tpu_custom_call.1} parent=0 // pred_region
    _
  $region9: #{tpu_custom_call.1} parent=0 // pred_fallthru
    _
  // Predicated region
  $region10: #{tpu_custom_call.1} parent=0 // pred_check
    _
  $region11: #{tpu_custom_call.1} parent=0 // pred_check_branch
    %18 = sbr.rel (0) target = $region13
  $region12: #{tpu_custom_call.1} parent=0 // pred_region
    _
  $region13: #{tpu_custom_call.1} parent=0 // pred_fallthru
    _
  // Predicated region
  $region14: #{tpu_custom_call.1} parent=0 // pred_check
    _
  $region15: #{tpu_custom_call.1} parent=0 // pred_check_branch
    %20 = sbr.rel (0) target = $region17
  $region16: #{tpu_custom_call.1} parent=0 // pred_region
    _
  $region17: #{tpu_custom_call.1} parent=0 // pred_fallthru
    _
  // Predicated region
  $region18: #{tpu_custom_call.1} parent=0 // pred_check
    _
  $region19: #{tpu_custom_call.1} parent=0 // pred_check_branch
    %22 = sbr.rel (0) target = $region21
  $region20: #{tpu_custom_call.1} parent=0 // pred_region
    _
  $region21: #{tpu_custom_call.1} parent=0 // pred_fallthru
    _
  // Predicated region
  $region22: #{tpu_custom_call.1} parent=0 // pred_check
    _
  $region23: #{tpu_custom_call.1} parent=0 // pred_check_branch
    %24 = sbr.rel (0) target = $region25
  $region24: #{tpu_custom_call.1} parent=0 // pred_region
    _
  $region25: #{tpu_custom_call.1} parent=0 // pred_fallthru
    _
  // Predicated region
  $region26: #{tpu_custom_call.1} parent=0 // pred_check
    _
  $region27: #{tpu_custom_call.1} parent=0 // pred_check_branch
    %26 = sbr.rel (0) target = $region29
  $region28: #{tpu_custom_call.1} parent=0 // pred_region
    _
  $region29: #{tpu_custom_call.1} parent=0 // pred_fallthru
    _
  %v28 = vld [vmem:[%s0] sm:$0xff]
  %v29 = vld [vmem:[%s0 + $0x8] sm:$0xff]
  %v30 = vld [vmem:[%s0 + $0x10] sm:$0xff]
  %v31 = vld [vmem:[%s0 + $0x18] sm:$0xff]
  %v32 = vld [vmem:[%s0 + $0x20] sm:$0xff]
  %v33 = vld [vmem:[%s0 + $0x28] sm:$0xff]
  %v34 = vld [vmem:[%s0 + $0x30] sm:$0xff]
  %v35 = vpack.c.bf16 %v28, %v28
  %v36 = vpack.c.bf16 %v29, %v29
  %v37 = vpack.c.bf16 %v30, %v30
  %v38 = vpack.c.bf16 %v31, %v31
  %v39 = vpack.c.bf16 %v32, %v32
  %v40 = vpack.c.bf16 %v33, %v33
  %v41 = vpack.c.bf16 %v34, %v34
  %v42 = vld [vmem:[%s1] sm:$0xf]
  %v43 = vld [vmem:[%s1 + $0x4] sm:$0xf]
  %v44 = vld [vmem:[%s1 + $0x8] sm:$0xf]
  %v45 = vld [vmem:[%s1 + $0xc] sm:$0xf]
  %v46 = vld [vmem:[%s1 + $0x10] sm:$0xf]
  %v47 = vld [vmem:[%s1 + $0x14] sm:$0xf]
  %v48 = vld [vmem:[%s1 + $0x18] sm:$0xf]
  %v49 = vld [vmem:[%s1 + $0x1c] sm:$0xf]
  %v50 = vld [vmem:[%s1 + $0x20] sm:$0xf]
  %v51 = vld [vmem:[%s1 + $0x24] sm:$0xf]
  %v52 = vld [vmem:[%s1 + $0x28] sm:$0xf]
  %v53 = vld [vmem:[%s1 + $0x2c] sm:$0xf]
  %v54 = vld [vmem:[%s1 + $0x30] sm:$0xf]
  %v55 = vld [vmem:[%s1 + $0x34] sm:$0xf]
  %v56 = vld [vmem:[%s1 + $0x38] sm:$0xf]
  %v57 = vld [vmem:[%s1 + $0x3c] sm:$0xf]
  %v58 = vld [vmem:[%s1 + $0x40] sm:$0xf]
  %v59 = vld [vmem:[%s1 + $0x44] sm:$0xf]
  %v60 = vld [vmem:[%s1 + $0x48] sm:$0xf]
  %v61 = vld [vmem:[%s1 + $0x4c] sm:$0xf]
  %v62 = vld [vmem:[%s1 + $0x50] sm:$0xf]
  %v63 = vld [vmem:[%s1 + $0x54] sm:$0xf]
  %v64 = vld [vmem:[%s1 + $0x58] sm:$0xf]
  %v65 = vld [vmem:[%s1 + $0x5c] sm:$0xf]
  %v66 = vld [vmem:[%s1 + $0x60] sm:$0xf]
  %v67 = vld [vmem:[%s1 + $0x64] sm:$0xf]
  %v68 = vld [vmem:[%s1 + $0x68] sm:$0xf]
  %v69 = vld [vmem:[%s1 + $0x6c] sm:$0xf]
  %v70 = vld [vmem:[%s1 + $0x70] sm:$0xf]
  %v71 = vld [vmem:[%s1 + $0x74] sm:$0xf]
  %v72 = vld [vmem:[%s1 + $0x78] sm:$0xf]
  %v73 = vld [vmem:[%s1 + $0x7c] sm:$0xf]
  %v74 = vld [vmem:[%s1 + $0x80] sm:$0xf]
  %v75 = vld [vmem:[%s1 + $0x84] sm:$0xf]
  %v76 = vld [vmem:[%s1 + $0x88] sm:$0xf]
  %v77 = vld [vmem:[%s1 + $0x8c] sm:$0xf]
  %v78 = vld [vmem:[%s1 + $0x90] sm:$0xf]
  %v79 = vld [vmem:[%s1 + $0x94] sm:$0xf]
  %v80 = vld [vmem:[%s1 + $0x98] sm:$0xf]
  %v81 = vld [vmem:[%s1 + $0x9c] sm:$0xf]
  %v82 = vld [vmem:[%s1 + $0xa0] sm:$0xf]
  %v83 = vld [vmem:[%s1 + $0xa4] sm:$0xf]
  %v84 = vld [vmem:[%s1 + $0xa8] sm:$0xf]
  %v85 = vld [vmem:[%s1 + $0xac] sm:$0xf]
  %v86 = vld [vmem:[%s1 + $0xb0] sm:$0xf]
  %v87 = vld [vmem:[%s1 + $0xb4] sm:$0xf]
  %v88 = vld [vmem:[%s1 + $0xb8] sm:$0xf]
  %v89 = vld [vmem:[%s1 + $0xbc] sm:$0xf]
  %v90 = vld [vmem:[%s1 + $0xc0] sm:$0xf]
  %v91 = vld [vmem:[%s1 + $0xc4] sm:$0xf]
  %v92 = vld [vmem:[%s1 + $0xc8] sm:$0xf]
  %v93 = vld [vmem:[%s1 + $0xcc] sm:$0xf]
  %v94 = vld [vmem:[%s1 + $0xd0] sm:$0xf]
  %v95 = vld [vmem:[%s1 + $0xd4] sm:$0xf]
  %v96 = vld [vmem:[%s1 + $0xd8] sm:$0xf]
  %v97 = vld [vmem:[%s1 + $0xdc] sm:$0xf]
  %v98 = vld [vmem:[%s1 + $0xe0] sm:$0xf]
  %v99 = vld [vmem:[%s1 + $0xe4] sm:$0xf]
  %v100 = vld [vmem:[%s1 + $0xe8] sm:$0xf]
  %v101 = vld [vmem:[%s1 + $0xec] sm:$0xf]
  %v102 = vld [vmem:[%s1 + $0xf0] sm:$0xf]
  %v103 = vld [vmem:[%s1 + $0xf4] sm:$0xf]
  %v104 = vld [vmem:[%s1 + $0xf8] sm:$0xf]
  %v105 = vld [vmem:[%s1 + $0xfc] sm:$0xf]
  %v106 = vld [vmem:[%s1 + $0x100] sm:$0xf]
  %v107 = vld [vmem:[%s1 + $0x104] sm:$0xf]
  %v108 = vld [vmem:[%s1 + $0x108] sm:$0xf]
  %v109 = vld [vmem:[%s1 + $0x10c] sm:$0xf]
  %v110 = vld [vmem:[%s1 + $0x110] sm:$0xf]
  %v111 = vld [vmem:[%s1 + $0x114] sm:$0xf]
  %v112 = vld [vmem:[%s1 + $0x118] sm:$0xf]
  %v113 = vld [vmem:[%s1 + $0x11c] sm:$0xf]
  %v114 = vld [vmem:[%s1 + $0x120] sm:$0xf]
  %v115 = vld [vmem:[%s1 + $0x124] sm:$0xf]
  %v116 = vld [vmem:[%s1 + $0x128] sm:$0xf]
  %v117 = vld [vmem:[%s1 + $0x12c] sm:$0xf]
  %v118 = vld [vmem:[%s1 + $0x130] sm:$0xf]
  %v119 = vld [vmem:[%s1 + $0x134] sm:$0xf]
  %v120 = vld [vmem:[%s1 + $0x138] sm:$0xf]
  %v121 = vld [vmem:[%s1 + $0x13c] sm:$0xf]
  %v122 = vld [vmem:[%s1 + $0x140] sm:$0xf]
  %v123 = vld [vmem:[%s1 + $0x144] sm:$0xf]
  %v124 = vld [vmem:[%s1 + $0x148] sm:$0xf]
  %v125 = vld [vmem:[%s1 + $0x14c] sm:$0xf]
  %v126 = vld [vmem:[%s1 + $0x150] sm:$0xf]
  %v127 = vld [vmem:[%s1 + $0x154] sm:$0xf]
  %v128 = vld [vmem:[%s1 + $0x158] sm:$0xf]
  %v129 = vld [vmem:[%s1 + $0x15c] sm:$0xf]
  %v130 = vld [vmem:[%s1 + $0x160] sm:$0xf]
  %v131 = vld [vmem:[%s1 + $0x164] sm:$0xf]
  %v132 = vld [vmem:[%s1 + $0x168] sm:$0xf]
  %v133 = vld [vmem:[%s1 + $0x16c] sm:$0xf]
  %v134 = vld [vmem:[%s1 + $0x170] sm:$0xf]
  %v135 = vld [vmem:[%s1 + $0x174] sm:$0xf]
  %v136 = vld [vmem:[%s1 + $0x178] sm:$0xf]
  %v137 = vld [vmem:[%s1 + $0x17c] sm:$0xf]
  %v138 = vld [vmem:[%s1 + $0x180] sm:$0xf]
  %v139 = vld [vmem:[%s1 + $0x184] sm:$0xf]
  %v140 = vld [vmem:[%s2] sm:$0x1]
  %v142 = vlaneseq
  %v143 = vshrl.u32 %v142, 7
  %v144 = vsub.s32 0, %v143
  %v145 = vrot.slane %v140, %v144
  %v245 = vunpack.c.l.b16 %v42
  %v246 = vunpack.c.l.b16 %v43
  %v247 = vunpack.c.l.b16 %v44
  %v248 = vunpack.c.l.b16 %v45
  %v249 = vunpack.c.l.b16 %v46
  %v250 = vunpack.c.l.b16 %v47
  %v251 = vunpack.c.l.b16 %v48
  %v252 = vunpack.c.l.b16 %v49
  %v253 = vunpack.c.l.b16 %v50
  %v254 = vunpack.c.l.b16 %v51
  %v255 = vunpack.c.l.b16 %v52
  %v256 = vunpack.c.l.b16 %v53
  %v257 = vunpack.c.l.b16 %v54
  %v258 = vunpack.c.l.b16 %v55
  %v259 = vunpack.c.l.b16 %v56
  %v260 = vunpack.c.l.b16 %v57
  %v261 = vunpack.c.l.b16 %v58
  %v262 = vunpack.c.l.b16 %v59
  %v263 = vunpack.c.l.b16 %v60
  %v264 = vunpack.c.l.b16 %v61
  %v265 = vunpack.c.l.b16 %v62
  %v266 = vunpack.c.l.b16 %v63
  %v267 = vunpack.c.l.b16 %v64
  %v268 = vunpack.c.l.b16 %v65
  %v269 = vunpack.c.l.b16 %v66
  %v270 = vunpack.c.l.b16 %v67
  %v271 = vunpack.c.l.b16 %v68
  %v272 = vunpack.c.l.b16 %v69
  %v273 = vunpack.c.l.b16 %v70
  %v274 = vunpack.c.l.b16 %v71
  %v275 = vunpack.c.l.b16 %v72
  %v276 = vunpack.c.l.b16 %v73
  %v277 = vunpack.c.l.b16 %v74
  %v278 = vunpack.c.l.b16 %v75
  %v279 = vunpack.c.l.b16 %v76
  %v280 = vunpack.c.l.b16 %v77
  %v281 = vunpack.c.l.b16 %v78
  %v282 = vunpack.c.l.b16 %v79
  %v283 = vunpack.c.l.b16 %v80
  %v284 = vunpack.c.l.b16 %v81
  %v285 = vunpack.c.l.b16 %v82
  %v286 = vunpack.c.l.b16 %v83
  %v287 = vunpack.c.l.b16 %v84
  %v288 = vunpack.c.l.b16 %v85
  %v289 = vunpack.c.l.b16 %v86
  %v290 = vunpack.c.l.b16 %v87
  %v291 = vunpack.c.l.b16 %v88
  %v292 = vunpack.c.l.b16 %v89
  %v293 = vunpack.c.l.b16 %v90
  %v294 = vunpack.c.l.b16 %v91
  %v295 = vunpack.c.l.b16 %v92
  %v296 = vunpack.c.l.b16 %v93
  %v297 = vunpack.c.l.b16 %v94
  %v298 = vunpack.c.l.b16 %v95
  %v299 = vunpack.c.l.b16 %v96
  %v300 = vunpack.c.l.b16 %v97
  %v301 = vunpack.c.l.b16 %v98
  %v302 = vunpack.c.l.b16 %v99
  %v303 = vunpack.c.l.b16 %v100
  %v304 = vunpack.c.l.b16 %v101
  %v305 = vunpack.c.l.b16 %v102
  %v306 = vunpack.c.l.b16 %v103
  %v307 = vunpack.c.l.b16 %v104
  %v308 = vunpack.c.l.b16 %v105
  %v309 = vunpack.c.l.b16 %v106
  %v310 = vunpack.c.l.b16 %v107
  %v311 = vunpack.c.l.b16 %v108
  %v312 = vunpack.c.l.b16 %v109
  %v313 = vunpack.c.l.b16 %v110
  %v314 = vunpack.c.l.b16 %v111
  %v315 = vunpack.c.l.b16 %v112
  %v316 = vunpack.c.l.b16 %v113
  %v317 = vunpack.c.l.b16 %v114
  %v318 = vunpack.c.l.b16 %v115
  %v319 = vunpack.c.l.b16 %v116
  %v320 = vunpack.c.l.b16 %v117
  %v321 = vunpack.c.l.b16 %v118
  %v322 = vunpack.c.l.b16 %v119
  %v323 = vunpack.c.l.b16 %v120
  %v324 = vunpack.c.l.b16 %v121
  %v325 = vunpack.c.l.b16 %v122
  %v326 = vunpack.c.l.b16 %v123
  %v327 = vunpack.c.l.b16 %v124
  %v328 = vunpack.c.l.b16 %v125
  %v329 = vunpack.c.l.b16 %v126
  %v330 = vunpack.c.l.b16 %v127
  %v331 = vunpack.c.l.b16 %v128
  %v332 = vunpack.c.l.b16 %v129
  %v333 = vunpack.c.l.b16 %v130
  %v334 = vunpack.c.l.b16 %v131
  %v335 = vunpack.c.l.b16 %v132
  %v336 = vunpack.c.l.b16 %v133
  %v337 = vunpack.c.l.b16 %v134
  %v338 = vunpack.c.l.b16 %v135
  %v339 = vunpack.c.l.b16 %v136
  %v340 = vunpack.c.l.b16 %v137
  %v341 = vunpack.c.l.b16 %v138
  %v342 = vunpack.c.l.b16 %v139
  %v343 = vpack.c.b16 %v246, %v245
  %v344 = vpack.c.b16 %v248, %v247
  %v345 = vpack.c.b16 %v250, %v249
  %v346 = vpack.c.b16 %v252, %v251
  %v347 = vpack.c.b16 %v254, %v253
  %v348 = vpack.c.b16 %v256, %v255
  %v349 = vpack.c.b16 %v258, %v257
  %v350 = vpack.c.b16 %v260, %v259
  %v351 = vpack.c.b16 %v262, %v261
  %v352 = vpack.c.b16 %v264, %v263
  %v353 = vpack.c.b16 %v266, %v265
  %v354 = vpack.c.b16 %v268, %v267
  %v355 = vpack.c.b16 %v270, %v269
  %v356 = vpack.c.b16 %v272, %v271
  %v357 = vpack.c.b16 %v274, %v273
  %v358 = vpack.c.b16 %v276, %v275
  %v359 = vpack.c.b16 %v278, %v277
  %v360 = vpack.c.b16 %v280, %v279
  %v361 = vpack.c.b16 %v282, %v281
  %v362 = vpack.c.b16 %v284, %v283
  %v363 = vpack.c.b16 %v286, %v285
  %v364 = vpack.c.b16 %v288, %v287
  %v365 = vpack.c.b16 %v290, %v289
  %v366 = vpack.c.b16 %v292, %v291
  %v367 = vpack.c.b16 %v294, %v293
  %v368 = vpack.c.b16 %v296, %v295
  %v369 = vpack.c.b16 %v298, %v297
  %v370 = vpack.c.b16 %v300, %v299
  %v371 = vpack.c.b16 %v302, %v301
  %v372 = vpack.c.b16 %v304, %v303
  %v373 = vpack.c.b16 %v306, %v305
  %v374 = vpack.c.b16 %v308, %v307
  %v375 = vpack.c.b16 %v310, %v309
  %v376 = vpack.c.b16 %v312, %v311
  %v377 = vpack.c.b16 %v314, %v313
  %v378 = vpack.c.b16 %v316, %v315
  %v379 = vpack.c.b16 %v318, %v317
  %v380 = vpack.c.b16 %v320, %v319
  %v381 = vpack.c.b16 %v322, %v321
  %v382 = vpack.c.b16 %v324, %v323
  %v383 = vpack.c.b16 %v326, %v325
  %v384 = vpack.c.b16 %v328, %v327
  %v385 = vpack.c.b16 %v330, %v329
  %v386 = vpack.c.b16 %v332, %v331
  %v387 = vpack.c.b16 %v334, %v333
  %v388 = vpack.c.b16 %v336, %v335
  %v389 = vpack.c.b16 %v338, %v337
  %v390 = vpack.c.b16 %v340, %v339
  %v391 = vpack.c.b16 %v342, %v341
  %vm441 = vcmask 130048
  %v443 = vsel %vm441, %v41, 0
  %445 = vmatprep.subr.bf16.mxu0 0
  %446 = vmatpush1.bf16.msra.mxu0 %v350
  %447 = vmatprep.subr.bf16.mxu0 0
  %448 = vmatpush1.bf16.msra.mxu0 %v349
  %449 = vmatprep.subr.bf16.mxu0 0
  %450 = vmatpush1.bf16.msra.mxu0 %v348
  %451 = vmatprep.subr.bf16.mxu0 0
  %452 = vmatpush1.bf16.msra.mxu0 %v347
  %453 = vmatprep.subr.bf16.mxu0 0
  %454 = vmatpush1.bf16.msra.mxu0 %v346
  %455 = vmatprep.subr.bf16.mxu0 0
  %456 = vmatpush1.bf16.msra.mxu0 %v345
  %457 = vmatprep.subr.bf16.mxu0 0
  %458 = vmatpush1.bf16.msra.mxu0 %v344
  %459 = vmatprep.subr.bf16.mxu0 0
  %460 = vmatpush1.bf16.msra.mxu0 %v343
  %461 = vmatprep.subr.bf16.mxu0 0
  %462 = vmatpush2.bf16.msra.mxu0 %v358
  %463 = vmatprep.subr.bf16.mxu0 0
  %464 = vmatpush2.bf16.msra.mxu0 %v357
  %465 = vmatprep.subr.bf16.mxu0 0
  %466 = vmatpush2.bf16.msra.mxu0 %v356
  %467 = vmatprep.subr.bf16.mxu0 0
  %468 = vmatpush2.bf16.msra.mxu0 %v355
  %469 = vmatprep.subr.bf16.mxu0 0
  %470 = vmatpush2.bf16.msra.mxu0 %v354
  %471 = vmatprep.subr.bf16.mxu0 0
  %472 = vmatpush2.bf16.msra.mxu0 %v353
  %473 = vmatprep.subr.bf16.mxu0 0
  %474 = vmatpush2.bf16.msra.mxu0 %v352
  %475 = vmatprep.subr.bf16.mxu0 0
  %476 = vmatpush2.bf16.msra.mxu0 %v351
  %477 = vmatprep.mubr.bf16.mxu0 %v36
  %478 = vmatmul.mubr.bf16.gmra.mxu0 %v35
  %v479 = vpop.f32.mrf.mxu0
  %v480 = vadd.f32 %v145, %v479
  %v481 = vpop.f32.mrf.mxu0
  %v482 = vpop.f32.mrf.mxu0
  %v483 = vpop.f32.mrf.mxu0
  %484 = vdwg.mxu0
  %485 = vmatprep.subr.bf16.mxu0 0
  %486 = vmatpush1.bf16.msra.mxu0 %v366
  %487 = vmatprep.subr.bf16.mxu0 0
  %488 = vmatpush1.bf16.msra.mxu0 %v365
  %489 = vmatprep.subr.bf16.mxu0 0
  %490 = vmatpush1.bf16.msra.mxu0 %v364
  %491 = vmatprep.subr.bf16.mxu0 0
  %492 = vmatpush1.bf16.msra.mxu0 %v363
  %493 = vmatprep.subr.bf16.mxu0 0
  %494 = vmatpush1.bf16.msra.mxu0 %v362
  %495 = vmatprep.subr.bf16.mxu0 0
  %496 = vmatpush1.bf16.msra.mxu0 %v361
  %497 = vmatprep.subr.bf16.mxu0 0
  %498 = vmatpush1.bf16.msra.mxu0 %v360
  %499 = vmatprep.subr.bf16.mxu0 0
  %500 = vmatpush1.bf16.msra.mxu0 %v359
  %501 = vmatprep.subr.bf16.mxu0 0
  %502 = vmatpush2.bf16.msra.mxu0 %v374
  %503 = vmatprep.subr.bf16.mxu0 0
  %504 = vmatpush2.bf16.msra.mxu0 %v373
  %505 = vmatprep.subr.bf16.mxu0 0
  %506 = vmatpush2.bf16.msra.mxu0 %v372
  %507 = vmatprep.subr.bf16.mxu0 0
  %508 = vmatpush2.bf16.msra.mxu0 %v371
  %509 = vmatprep.subr.bf16.mxu0 0
  %510 = vmatpush2.bf16.msra.mxu0 %v370
  %511 = vmatprep.subr.bf16.mxu0 0
  %512 = vmatpush2.bf16.msra.mxu0 %v369
  %513 = vmatprep.subr.bf16.mxu0 0
  %514 = vmatpush2.bf16.msra.mxu0 %v368
  %515 = vmatprep.subr.bf16.mxu0 0
  %516 = vmatpush2.bf16.msra.mxu0 %v367
  %517 = vmatprep.mubr.bf16.mxu0 %v38
  %518 = vmatmul.mubr.bf16.gmra.mxu0 %v37
  %v519 = vpop.f32.mrf.mxu0
  %v520 = vadd.f32 %v480, %v519
  %v521 = vpop.f32.mrf.mxu0
  %v522 = vpop.f32.mrf.mxu0
  %v523 = vpop.f32.mrf.mxu0
  %524 = vdwg.mxu0
  %525 = vmatprep.subr.bf16.mxu0 0
  %526 = vmatpush1.bf16.msra.mxu0 %v382
  %527 = vmatprep.subr.bf16.mxu0 0
  %528 = vmatpush1.bf16.msra.mxu0 %v381
  %529 = vmatprep.subr.bf16.mxu0 0
  %530 = vmatpush1.bf16.msra.mxu0 %v380
  %531 = vmatprep.subr.bf16.mxu0 0
  %532 = vmatpush1.bf16.msra.mxu0 %v379
  %533 = vmatprep.subr.bf16.mxu0 0
  %534 = vmatpush1.bf16.msra.mxu0 %v378
  %535 = vmatprep.subr.bf16.mxu0 0
  %536 = vmatpush1.bf16.msra.mxu0 %v377
  %537 = vmatprep.subr.bf16.mxu0 0
  %538 = vmatpush1.bf16.msra.mxu0 %v376
  %539 = vmatprep.subr.bf16.mxu0 0
  %540 = vmatpush1.bf16.msra.mxu0 %v375
  %541 = vmatprep.subr.bf16.mxu0 0
  %542 = vmatpush2.bf16.msra.mxu0 %v390
  %543 = vmatprep.subr.bf16.mxu0 0
  %544 = vmatpush2.bf16.msra.mxu0 %v389
  %545 = vmatprep.subr.bf16.mxu0 0
  %546 = vmatpush2.bf16.msra.mxu0 %v388
  %547 = vmatprep.subr.bf16.mxu0 0
  %548 = vmatpush2.bf16.msra.mxu0 %v387
  %549 = vmatprep.subr.bf16.mxu0 0
  %550 = vmatpush2.bf16.msra.mxu0 %v386
  %551 = vmatprep.subr.bf16.mxu0 0
  %552 = vmatpush2.bf16.msra.mxu0 %v385
  %553 = vmatprep.subr.bf16.mxu0 0
  %554 = vmatpush2.bf16.msra.mxu0 %v384
  %555 = vmatprep.subr.bf16.mxu0 0
  %556 = vmatpush2.bf16.msra.mxu0 %v383
  %557 = vmatprep.mubr.bf16.mxu0 %v40
  %558 = vmatmul.mubr.bf16.gmra.mxu0 %v39
  %v559 = vpop.f32.mrf.mxu0
  %v560 = vadd.f32 %v520, %v559
  %v561 = vpop.f32.mrf.mxu0
  %v562 = vpop.f32.mrf.mxu0
  %v563 = vpop.f32.mrf.mxu0
  %564 = vdwg.mxu0
  %565 = vmatprep.subr.bf16.mxu0 0
  %566 = vmatpush1.bf16.msra.mxu0 0
  %567 = vmatprep.subr.bf16.mxu0 0
  %568 = vmatpush1.bf16.msra.mxu0 0
  %569 = vmatprep.subr.bf16.mxu0 0
  %570 = vmatpush1.bf16.msra.mxu0 0
  %571 = vmatprep.subr.bf16.mxu0 0
  %572 = vmatpush1.bf16.msra.mxu0 0
  %573 = vmatprep.subr.bf16.mxu0 0
  %574 = vmatpush1.bf16.msra.mxu0 0
  %575 = vmatprep.subr.bf16.mxu0 0
  %576 = vmatpush1.bf16.msra.mxu0 0
  %577 = vmatprep.subr.bf16.mxu0 0
  %578 = vmatpush1.bf16.msra.mxu0 0
  %579 = vmatprep.subr.bf16.mxu0 0
  %580 = vmatpush1.bf16.msra.mxu0 %v391
  %581 = vmatprep.subr.bf16.mxu0 0
  %582 = vmatpush2.bf16.msra.mxu0 0
  %583 = vmatprep.subr.bf16.mxu0 0
  %584 = vmatpush2.bf16.msra.mxu0 0
  %585 = vmatprep.subr.bf16.mxu0 0
  %586 = vmatpush2.bf16.msra.mxu0 0
  %587 = vmatprep.subr.bf16.mxu0 0
  %588 = vmatpush2.bf16.msra.mxu0 0
  %589 = vmatprep.subr.bf16.mxu0 0
  %590 = vmatpush2.bf16.msra.mxu0 0
  %591 = vmatprep.subr.bf16.mxu0 0
  %592 = vmatpush2.bf16.msra.mxu0 0
  %593 = vmatprep.subr.bf16.mxu0 0
  %594 = vmatpush2.bf16.msra.mxu0 0
  %595 = vmatprep.subr.bf16.mxu0 0
  %596 = vmatpush2.bf16.msra.mxu0 0
  %597 = vmatprep.mubr.bf16.mxu0 0
  %598 = vmatmul.mubr.bf16.gmra.mxu0 %v443
  %v599 = vpop.f32.mrf.mxu0
  %v600 = vadd.f32 %v560, %v599
  %v601 = vpop.f32.mrf.mxu0
  %v602 = vpop.f32.mrf.mxu0
  %v603 = vpop.f32.mrf.mxu0
  %604 = vdwg.mxu0
  %vm605 = vcmp.ge.f32.partialorder %v600, 0.0
  %v606 = vmul.f32 %v600, 0.01
  %v607 = vsel %vm605, %v600, %v606
  %v608 = vpack.c.bf16 %v607, %v607
  %v609 = vld [vmem:[%s3] sm:$0xf]
  %v610 = vld [vmem:[%s3 + $0x4] sm:$0xf]
  %v611 = vld [vmem:[%s3 + $0x8] sm:$0xf]
  %v612 = vld [vmem:[%s3 + $0xc] sm:$0xf]
  %v613 = vld [vmem:[%s4] sm:$0x1]
  %v615 = vlaneseq
  %v616 = vshrl.u32 %v615, 7
  %v617 = vsub.s32 0, %v616
  %v618 = vrot.slane %v613, %v617
  %v624 = vunpack.c.l.b16 %v609
  %v625 = vunpack.c.l.b16 %v610
  %v626 = vunpack.c.l.b16 %v611
  %v627 = vunpack.c.l.b16 %v612
  %v628 = vpack.c.b16 %v625, %v624
  %v629 = vpack.c.b16 %v627, %v626
  %vm632 = vcmask 261120
  %v634 = vsel %vm632, %v608, 0
  %636 = vmatprep.subr.bf16.mxu0 0
  %637 = vmatpush1.bf16.msra.mxu0 0
  %638 = vmatprep.subr.bf16.mxu0 0
  %639 = vmatpush1.bf16.msra.mxu0 0
  %640 = vmatprep.subr.bf16.mxu0 0
  %641 = vmatpush1.bf16.msra.mxu0 0
  %642 = vmatprep.subr.bf16.mxu0 0
  %643 = vmatpush1.bf16.msra.mxu0 0
  %644 = vmatprep.subr.bf16.mxu0 0
  %645 = vmatpush1.bf16.msra.mxu0 0
  %646 = vmatprep.subr.bf16.mxu0 0
  %647 = vmatpush1.bf16.msra.mxu0 0
  %648 = vmatprep.subr.bf16.mxu0 0
  %649 = vmatpush1.bf16.msra.mxu0 %v629
  %650 = vmatprep.subr.bf16.mxu0 0
  %651 = vmatpush1.bf16.msra.mxu0 %v628
  %652 = vmatprep.subr.bf16.mxu0 0
  %653 = vmatpush2.bf16.msra.mxu0 0
  %654 = vmatprep.subr.bf16.mxu0 0
  %655 = vmatpush2.bf16.msra.mxu0 0
  %656 = vmatprep.subr.bf16.mxu0 0
  %657 = vmatpush2.bf16.msra.mxu0 0
  %658 = vmatprep.subr.bf16.mxu0 0
  %659 = vmatpush2.bf16.msra.mxu0 0
  %660 = vmatprep.subr.bf16.mxu0 0
  %661 = vmatpush2.bf16.msra.mxu0 0
  %662 = vmatprep.subr.bf16.mxu0 0
  %663 = vmatpush2.bf16.msra.mxu0 0
  %664 = vmatprep.subr.bf16.mxu0 0
  %665 = vmatpush2.bf16.msra.mxu0 0
  %666 = vmatprep.subr.bf16.mxu0 0
  %667 = vmatpush2.bf16.msra.mxu0 0
  %668 = vmatprep.mubr.bf16.mxu0 0
  %669 = vmatmul.mubr.bf16.gmra.mxu0 %v634
  %v670 = vpop.f32.mrf.mxu0
  %v671 = vadd.f32 %v618, %v670
  %v672 = vpop.f32.mrf.mxu0
  %v673 = vpop.f32.mrf.mxu0
  %v674 = vpop.f32.mrf.mxu0
  %675 = vdwg.mxu0
  %vm676 = vcmp.ge.f32.partialorder %v671, 0.0
  %v677 = vmul.f32 %v671, 0.01
  %v678 = vsel %vm676, %v671, %v677
  %v679 = vld [vmem:[%s5] sm:$0x1]
  %v681 = vlaneseq
  %v682 = vshrl.u32 %v681, 7
  %v683 = vsub.s32 0, %v682
  %v684 = vrot.slane %v679, %v683
  %v686 = vmul.f32 %v678, %v684
  %v687 = vsel %vm632, %v686, 0.0
  %688 = vadd.xlane.f32.xlu0 %v687
  %v689 = vpop.xlane.xlu0 %688
  %s690 = sld [smem:[#allocation2]]
  %v691 = vstv %s690
  %v692 = vadd.f32 %v689, %v691
  %v693 = vsub.f32 0.0, %v692
  %v694 = vmul.f32 %v693, 1.442695
  %v695 = vpow.pop %v694
  %v696 = vadd.f32 %v695, 1.0
  %v697 = vrcp.pop %v696
  %v698 = vmul.f32 1.0, %v697
  %vm699 = vcmask 7168
  %700 = vst.msk [vmem:[%s7] sm:$0xff] %vm699, %v698
  // Predicated region
  $region30: #{tpu_custom_call.1} parent=0 // pred_check
    _
  $region31: #{tpu_custom_call.1} parent=0 // pred_check_branch
    %702 = sbr.rel (0) target = $region33
  $region32: #{tpu_custom_call.1} parent=0 // pred_region
    _
  $region33: #{tpu_custom_call.1} parent=0 // pred_fallthru
    _
  // Predicated region
  $region34: #{tpu_custom_call.1} parent=0 // pred_check
    _
  $region35: #{tpu_custom_call.1} parent=0 // pred_check_branch
    %704 = sbr.rel (0) target = $region37
  $region36: #{tpu_custom_call.1} parent=0 // pred_region
    _
  $region37: #{tpu_custom_call.1} parent=0 // pred_fallthru
    _

</llo_original>
